<compile_context>
chip_gen: v7x
topology: tpu7x:2x2x1
jax: 0.10.0
libtpu: 0.0.40
codegen_flags: <defaults>
</compile_context>

<pallas_src>
import functools

import jax
import jax.numpy as jnp
from jax import lax
from jax.experimental import pallas as pl
from jax.experimental.pallas import tpu as pltpu

_LANE = 128
_EPS = 1e-8


def _vmem_capacity_bytes() -> int:
    """Physical per-core VMEM (generation aware); conservative fallback."""
    try:
        return int(pltpu.get_tpu_info().vmem_capacity_bytes)
    except Exception:
        return 64 << 20  # v7x per-TC VMEM — smallest of current generations


def _lane_densify_factor(C: int, T: int) -> int:
    """Packing factor k so (C, T) -> (C*k, T//k) fills >= 8 sublanes while the
    last dim stays a multiple of 128. Returns 1 when not applicable."""
    if C >= 8 or T % _LANE != 0:
        return 1
    max_k = T // _LANE          # k must divide T // 128
    k0 = -(-8 // C)             # ceil(8 / C)
    for k in range(k0, max_k + 1):
        if max_k % k == 0:
            return k
    return 1


def _pick_tile_cols(cols: int, T: int, cap=None) -> int:
    if cap is not None:
        cols = min(cols, cap)
    cols = max(_LANE, (cols // _LANE) * _LANE)
    if cols >= T:
        return T                # full extent — exempt from the 128 rule
    return cols


# ---------------------------------------------------------------------------
# Path A: whole-sample kernel — one grid step per batch element.
# ---------------------------------------------------------------------------
def _gln_whole_kernel(x_ref, gamma_ref, beta_ref, o_ref, *, inv_count):
    # x_ref: (C, T) — batch dim squeezed by the BlockSpec. Re-read x_ref per
    # phase instead of hoisting one full-slab f32 temp: VMEM reads are cheap
    # (3 vld/cycle) and the live f32 copy is what blows the v7x 64 MiB budget.
    s1 = jnp.sum(x_ref[...].astype(jnp.float32))
    mean = s1 * inv_count

    # Two-pass variance (matches PyTorch's (x - mean)^2 form, no catastrophic
    # cancellation). The slab is already VMEM-resident, so the extra pass is
    # VPU-only — no additional HBM traffic.
    xc = x_ref[...].astype(jnp.float32) - mean
    var = jnp.sum(xc * xc) * inv_count
    inv = lax.rsqrt(var + _EPS)          # EUP rsqrt — no per-element divide

    # Fold normalization into the per-channel affine: out = a*x + b.
    a = gamma_ref[...] * inv             # (C, 1)
    b = beta_ref[...] - a * mean         # (C, 1)
    o_ref[...] = (a * x_ref[...].astype(jnp.float32) + b).astype(o_ref.dtype)


# ---------------------------------------------------------------------------
# Path B: tiled two-phase fallback for slabs that don't fit VMEM.
# ---------------------------------------------------------------------------
def _gln_stats_kernel(x_ref, s1_ref, s2_ref, *, t_total, t_tile, needs_mask):
    # x_ref: (C, tT) tile; s1/s2: (1, 1) accumulators resident over the T axis.
    t = pl.program_id(1)

    @pl.when(t == 0)
    def _():
        s1_ref[...] = jnp.zeros_like(s1_ref)
        s2_ref[...] = jnp.zeros_like(s2_ref)

    x = x_ref[...].astype(jnp.float32)
    if needs_mask:  # static flag: only the ragged-last-tile case pays for it
        col = lax.broadcasted_iota(jnp.int32, x.shape, 1) + t * t_tile
        x = jnp.where(col < t_total, x, 0.0)
    s1_ref[...] += jnp.sum(x)
    s2_ref[...] += jnp.sum(x * x)


def _gln_apply_kernel(a_ref, b_ref, x_ref, o_ref):
    # a_ref/b_ref: (C, 1) pre-folded affine; x_ref/o_ref: (C, tT). Pure FMA.
    o_ref[...] = (a_ref[...] * x_ref[...].astype(jnp.float32)
                  + b_ref[...]).astype(o_ref.dtype)


# ---------------------------------------------------------------------------
# Wrapper
# ---------------------------------------------------------------------------
def global_channel_layer_norm(x, gamma, beta, *, force_tiled=False,
                              _max_tile_cols=None):
    """x: (N, C, T); gamma, beta: (C,). Returns same shape/dtype as x."""
    N, C, T = x.shape
    inv_count = 1.0 / float(C * T)
    vmem_cap = _vmem_capacity_bytes()

    # Small-C lane densification: free row-major re-view to fill all sublanes.
    k = _lane_densify_factor(C, T)
    if k > 1:
        x_r = x.reshape(N, C * k, T // k)
        g_vec = jnp.repeat(gamma.astype(jnp.float32), k)
        b_vec = jnp.repeat(beta.astype(jnp.float32), k)
        Cr, Tr = C * k, T // k
    else:
        x_r = x
        g_vec = gamma.astype(jnp.float32)
        b_vec = beta.astype(jnp.float32)
        Cr, Tr = C, T
    gamma2d = g_vec.reshape(Cr, 1)
    beta2d = b_vec.reshape(Cr, 1)

    itemsize = x.dtype.itemsize
    slab_in = Cr * Tr * itemsize
    slab_f32 = Cr * Tr * 4
    # Double-buffered in + out blocks, one f32 slab of headroom for temporaries.
    whole_needed = 4 * slab_in + slab_f32 + (2 << 20)

    use_whole = (whole_needed <= int(vmem_cap * 0.8)) and not force_tiled

    # v7x proxy (64 MiB per-TC VMEM, 2 TCs/chip): with N == 1 the whole-sample
    # grid=(N,) feeds a single core; the tiled phase-2 grid feeds both.
    if vmem_cap <= (64 << 20) and N == 1 and slab_in > (8 << 20):
        use_whole = False

    if use_whole:
        vmem_limit = int(min(max(whole_needed, 16 << 20), int(vmem_cap * 0.9)))
        out = pl.pallas_call(
            functools.partial(_gln_whole_kernel, inv_count=inv_count),
            out_shape=jax.ShapeDtypeStruct((N, Cr, Tr), x.dtype),
            grid=(N,),
            in_specs=[
                pl.BlockSpec((None, Cr, Tr), lambda n: (n, 0, 0)),
                pl.BlockSpec((Cr, 1), lambda n: (0, 0)),
                pl.BlockSpec((Cr, 1), lambda n: (0, 0)),
            ],
            out_specs=pl.BlockSpec((None, Cr, Tr), lambda n: (n, 0, 0)),
            compiler_params=pltpu.CompilerParams(
                dimension_semantics=("parallel",),
                vmem_limit_bytes=vmem_limit,
            ),
        )(x_r, gamma2d, beta2d)
    else:
        budget = int(vmem_cap * 0.7)

        # ---- Phase 1: per-sample sum / sum-of-squares over T tiles --------
        # Only x is streamed (double-buffered); accumulators are negligible.
        # TODO(synk): optionally sweep pipeline_mode=pl.Buffered(3) on x here.
        tT1 = _pick_tile_cols(budget // (2 * Cr * itemsize), Tr, _max_tile_cols)
        nT1 = -(-Tr // tT1)
        needs_mask = (Tr % tT1) != 0
        p1_needed = 2 * Cr * tT1 * itemsize + (2 << 20)
        p1_limit = int(min(max(p1_needed, 16 << 20), int(vmem_cap * 0.9)))

        s1, s2 = pl.pallas_call(
            functools.partial(_gln_stats_kernel, t_total=Tr, t_tile=tT1,
                              needs_mask=needs_mask),
            out_shape=(jax.ShapeDtypeStruct((N, 1, 1), jnp.float32),
                       jax.ShapeDtypeStruct((N, 1, 1), jnp.float32)),
            grid=(N, nT1),
            in_specs=[pl.BlockSpec((None, Cr, tT1), lambda n, t: (n, 0, t))],
            out_specs=(pl.BlockSpec((None, 1, 1), lambda n, t: (n, 0, 0)),
                       pl.BlockSpec((None, 1, 1), lambda n, t: (n, 0, 0))),
            compiler_params=pltpu.CompilerParams(
                dimension_semantics=("parallel", "arbitrary"),
                vmem_limit_bytes=p1_limit,
            ),
        )(x_r)

        # ---- Fold stats into per-sample affine vectors in plain JAX -------
        # out = a*x + b with a = gamma*rsqrt(var+eps), b = beta - a*mean.
        # NOTE: single-pass var = E[x^2]-E[x]^2 can lose precision when
        # |mean| >> std; acceptable here and documented (whole path uses the
        # exact two-pass form).
        mean = s1 * inv_count                                    # (N, 1, 1)
        var = jnp.maximum(s2 * inv_count - mean * mean, 0.0)     # (N, 1, 1)
        a = g_vec.reshape(1, Cr, 1) * lax.rsqrt(var + _EPS)      # (N, Cr, 1)
        b = b_vec.reshape(1, Cr, 1) - a * mean                   # (N, Cr, 1)

        # ---- Phase 2: broadcast FMA, fully parallel over (N, T tiles) -----
        per_col = Cr * (2 * itemsize + 2 * itemsize + 4)
        tT2 = _pick_tile_cols(budget // per_col, Tr, _max_tile_cols)
        nT2 = -(-Tr // tT2)
        p2_needed = 4 * Cr * tT2 * itemsize + Cr * tT2 * 4 + (2 << 20)
        p2_limit = int(min(max(p2_needed, 16 << 20), int(vmem_cap * 0.9)))

        out = pl.pallas_call(
            _gln_apply_kernel,
            out_shape=jax.ShapeDtypeStruct((N, Cr, Tr), x.dtype),
            grid=(N, nT2),
            in_specs=[
                pl.BlockSpec((None, Cr, 1), lambda n, t: (n, 0, 0)),
                pl.BlockSpec((None, Cr, 1), lambda n, t: (n, 0, 0)),
                pl.BlockSpec((None, Cr, tT2), lambda n, t: (n, 0, t)),
            ],
            out_specs=pl.BlockSpec((None, Cr, tT2), lambda n, t: (n, 0, t)),
            compiler_params=pltpu.CompilerParams(
                dimension_semantics=("parallel", "parallel"),
                vmem_limit_bytes=p2_limit,
            ),
        )(a, b, x_r)

    if k > 1:
        out = out.reshape(N, C, T)
    return out


def _reference(x, gamma, beta):
    # Pure-JAX reference mirroring the PyTorch forward.
    mean = jnp.mean(x, axis=(1, 2), keepdims=True)
    var = jnp.mean((x - mean) ** 2, axis=(1, 2), keepdims=True)
    normed = (x - mean) / jnp.sqrt(var + 1e-8)
    return gamma[None, :, None] * normed + beta[None, :, None]


if __name__ == "__main__":
    key = jax.random.PRNGKey(0)
    kx, kg, kb = jax.random.split(key, 3)
    N, C, T = 2, 4, 16

    x = jax.random.normal(kx, (N, C, T), dtype=jnp.float32)
    # Non-trivial (but deterministic) affine so the gain/bias path is tested;
    # PyTorch init would be gamma=1, beta=0.
    gamma = 1.0 + 0.1 * jax.random.normal(kg, (C,), dtype=jnp.float32)
    beta = 0.1 * jax.random.normal(kb, (C,), dtype=jnp.float32)

    ref = _reference(x, gamma, beta)

    # 1) Whole-sample fast path (ragged T, no padding).
    out = jax.block_until_ready(global_channel_layer_norm(x, gamma, beta))
    assert out.shape == (N, C, T) and out.dtype == x.dtype
    assert jnp.allclose(out, ref, atol=1e-4, rtol=1e-4)

    # 2) Tiled two-phase fallback (degenerate full-extent T tile).
    out_tiled = jax.block_until_ready(
        global_channel_layer_norm(x, gamma, beta, force_tiled=True))
    assert out_tiled.shape == (N, C, T)
    assert jnp.allclose(out_tiled, ref, atol=1e-4, rtol=1e-4)

    # 3) Tiled fallback with a ragged last tile (iota masking + dropped OOB
    #    writes exercised via the test-only tile cap).
    T2 = 200
    x2 = jax.random.normal(kx, (N, C, T2), dtype=jnp.float32)
    ref2 = _reference(x2, gamma, beta)
    out2 = jax.block_until_ready(global_channel_layer_norm(
        x2, gamma, beta, force_tiled=True, _max_tile_cols=128))
    assert out2.shape == (N, C, T2)
    assert jnp.allclose(out2, ref2, atol=1e-4, rtol=1e-4)

    # 4) Lane-densified whole path (C < 8, T multiple of 128 -> (C*k, T/k)).
    T3 = 256
    x3 = jax.random.normal(kb, (N, C, T3), dtype=jnp.float32)
    ref3 = _reference(x3, gamma, beta)
    out3 = jax.block_until_ready(global_channel_layer_norm(x3, gamma, beta))
    assert out3.shape == (N, C, T3)
    assert jnp.allclose(out3, ref3, atol=1e-4, rtol=1e-4)

    print("KERNEL_OK")
</pallas_src>

<mosaic_0001>
module attributes {stable_mosaic.version = 11 : i64} {
  func.func @_gln_whole_kernel(%arg0: i32, %arg1: memref<1x4x16xf32, #tpu.memory_space<vmem>>, %arg2: memref<4x1xf32, #tpu.memory_space<vmem>>, %arg3: memref<4x1xf32, #tpu.memory_space<vmem>>, %arg4: memref<1x4x16xf32, #tpu.memory_space<vmem>>) attributes {dimension_semantics = [#tpu.dimension_semantics<parallel>], iteration_bounds = array<i64: 2>, scalar_prefetch = 0 : i64, scratch_operands = 0 : i64, tpu.core_type = #tpu.core_type<tc>, window_params = [{transform_indices = @transform_0, window_bounds = array<i64: 1, 4, 16>}, {pipeline_mode = #tpu.pipeline_mode<synchronous>, transform_indices = @transform_1, window_bounds = array<i64: 4, 1>}, {pipeline_mode = #tpu.pipeline_mode<synchronous>, transform_indices = @transform_2, window_bounds = array<i64: 4, 1>}, {transform_indices = @transform_3, window_bounds = array<i64: 1, 4, 16>}]} {
    %c0 = arith.constant 0 : index
    %c0_0 = arith.constant 0 : index
    %c0_1 = arith.constant 0 : index
    %0 = vector.load %arg1[%c0, %c0_0, %c0_1] : memref<1x4x16xf32, #tpu.memory_space<vmem>>, vector<1x4x16xf32>
    %1 = vector.shape_cast %0 : vector<1x4x16xf32> to vector<4x16xf32>
    %2 = vector.shape_cast %1 : vector<4x16xf32> to vector<1x4x16xf32>
    %cst = arith.constant dense<0.000000e+00> : vector<1xf32>
    %3 = vector.multi_reduction <add>, %2, %cst [1, 2] : vector<1x4x16xf32> to vector<1xf32>
    %4 = vector.shape_cast %3 : vector<1xf32> to vector<1x1x1xf32>
    %5 = vector.extract %4[0, 0, 0] : f32 from vector<1x1x1xf32>
    %cst_2 = arith.constant 1.562500e-02 : f32
    %6 = arith.mulf %5, %cst_2 : f32
    %c0_3 = arith.constant 0 : index
    %c0_4 = arith.constant 0 : index
    %c0_5 = arith.constant 0 : index
    %7 = vector.load %arg1[%c0_3, %c0_4, %c0_5] : memref<1x4x16xf32, #tpu.memory_space<vmem>>, vector<1x4x16xf32>
    %8 = vector.shape_cast %7 : vector<1x4x16xf32> to vector<4x16xf32>
    %9 = vector.broadcast %6 : f32 to vector<4x16xf32>
    %10 = arith.subf %8, %9 : vector<4x16xf32>
    %11 = arith.mulf %10, %10 : vector<4x16xf32>
    %12 = vector.shape_cast %11 : vector<4x16xf32> to vector<1x4x16xf32>
    %cst_6 = arith.constant dense<0.000000e+00> : vector<1xf32>
    %13 = vector.multi_reduction <add>, %12, %cst_6 [1, 2] : vector<1x4x16xf32> to vector<1xf32>
    %14 = vector.shape_cast %13 : vector<1xf32> to vector<1x1x1xf32>
    %15 = vector.extract %14[0, 0, 0] : f32 from vector<1x1x1xf32>
    %cst_7 = arith.constant 1.562500e-02 : f32
    %16 = arith.mulf %15, %cst_7 : f32
    %cst_8 = arith.constant 9.99999993E-9 : f32
    %17 = arith.addf %16, %cst_8 : f32
    %18 = math.rsqrt %17 : f32
    %c0_9 = arith.constant 0 : index
    %c0_10 = arith.constant 0 : index
    %19 = vector.load %arg2[%c0_9, %c0_10] : memref<4x1xf32, #tpu.memory_space<vmem>>, vector<4x1xf32>
    %20 = vector.broadcast %18 : f32 to vector<4x1xf32>
    %21 = arith.mulf %19, %20 : vector<4x1xf32>
    %c0_11 = arith.constant 0 : index
    %c0_12 = arith.constant 0 : index
    %22 = vector.load %arg3[%c0_11, %c0_12] : memref<4x1xf32, #tpu.memory_space<vmem>>, vector<4x1xf32>
    %23 = vector.broadcast %6 : f32 to vector<4x1xf32>
    %24 = arith.mulf %21, %23 : vector<4x1xf32>
    %25 = arith.subf %22, %24 : vector<4x1xf32>
    %c0_13 = arith.constant 0 : index
    %c0_14 = arith.constant 0 : index
    %c0_15 = arith.constant 0 : index
    %26 = vector.load %arg1[%c0_13, %c0_14, %c0_15] : memref<1x4x16xf32, #tpu.memory_space<vmem>>, vector<1x4x16xf32>
    %27 = vector.shape_cast %26 : vector<1x4x16xf32> to vector<4x16xf32>
    %28 = vector.broadcast %21 : vector<4x1xf32> to vector<4x16xf32>
    %29 = arith.mulf %28, %27 : vector<4x16xf32>
    %30 = vector.broadcast %25 : vector<4x1xf32> to vector<4x16xf32>
    %31 = arith.addf %29, %30 : vector<4x16xf32>
    %c0_16 = arith.constant 0 : index
    %c0_17 = arith.constant 0 : index
    %c0_18 = arith.constant 0 : index
    %32 = vector.load %arg4[%c0_16, %c0_17, %c0_18] : memref<1x4x16xf32, #tpu.memory_space<vmem>>, vector<1x4x16xf32>
    %33 = vector.shape_cast %32 : vector<1x4x16xf32> to vector<4x16xf32>
    %34 = vector.shape_cast %31 : vector<4x16xf32> to vector<1x4x16xf32>
    tpu.vector_store %arg4[%c0_16, %c0_17, %c0_18], %34 {strides = array<i32>} : memref<1x4x16xf32, #tpu.memory_space<vmem>>, vector<1x4x16xf32>,
    return
  }
  func.func @transform_0(%arg0: i32) -> (i32, i32, i32) {
    %c0_i32 = arith.constant 0 : i32
    %c0_i32_0 = arith.constant 0 : i32
    %c0_i32_1 = arith.constant 0 : i32
    return %arg0, %c0_i32, %c0_i32_0 : i32, i32, i32
  }
  func.func @transform_1(%arg0: i32) -> (i32, i32) {
    %c0_i32 = arith.constant 0 : i32
    %c0_i32_0 = arith.constant 0 : i32
    %c0_i32_1 = arith.constant 0 : i32
    return %c0_i32, %c0_i32_0 : i32, i32
  }
  func.func @transform_2(%arg0: i32) -> (i32, i32) {
    %c0_i32 = arith.constant 0 : i32
    %c0_i32_0 = arith.constant 0 : i32
    %c0_i32_1 = arith.constant 0 : i32
    return %c0_i32, %c0_i32_0 : i32, i32
  }
  func.func @transform_3(%arg0: i32) -> (i32, i32, i32) {
    %c0_i32 = arith.constant 0 : i32
    %c0_i32_0 = arith.constant 0 : i32
    %c0_i32_1 = arith.constant 0 : i32
    return %arg0, %c0_i32, %c0_i32_0 : i32, i32, i32
  }
}

</mosaic_0001>

<llo_original>
// kernel: tpu_custom_call.1
$region0: #{tpu_custom_call.1}
  #allocation0 [shape = 'u32[]', space=smem, size = 0x4, offset = 0x4, fixed_abs, tag = 'smem constant byte address 0x4 - core index']
  #allocation1 [shape = 'u32[144,128]{1,0:T(1,128)}', space=vmem, size = 0x12000, scoped, tag = 'internal scratch']
  %s0 = inlined_call_operand.vmem [shape: f32[2,4,16], index: 0, kind: input, shape index: {}]
  %s1 = inlined_call_operand.vmem [shape: f32[4,1], index: 1, kind: input, shape index: {}]
  %s2 = inlined_call_operand.vmem [shape: f32[4,1], index: 2, kind: input, shape index: {}]
  %s3 = inlined_call_operand.hbm [shape: f32[2,4,16], index: 3, kind: output, shape index: {}]
  %s4 = sld [smem:[#allocation0]]
  $region45: #{tpu_custom_call.1} parent=0
    _
  %s6 = ssub.s32 1, %s4
  %s7 = scalar_select 0, %s6, %s4
  $region1: #{tpu_custom_call.1} parent=0
    #allocation2 [shape = 'u8[4096]{0}', space=vmem, size = 0x1000, scoped, tag = 'output window, operand 0']
    #allocation3 [shape = 's32[2]{0}', space=sflag, size = 0x8, scoped, tag = 'scoped memory for tpu_custom_call.1']
    %8 = vsyncpa [#allocation3], 0
    %s9 = scalar_lea.sflag [#allocation3], 1
    %10 = vsyncpa %s9, 0
    loop: start=0, step=1, limit=4
    $region2: #{tpu_custom_call.1} parent=1 // loop_pre_header
      _
    $region3: #{tpu_custom_call.1} parent=1 // loop_header
      %s12 = sphi 0, %s16
      %p13 = scmp.ge.s32.totalorder %s12, 4
      %s22 = sphi 0, %s24
      %s25 = sphi 0, %s22
      %s26 = sphi 0, %s25
      %s42 = sphi 0, %s26
      %s46 = sphi 0, %s46
      %s48 = sphi 0, %s46
      %s49 = sphi 0, %s48
      %s63 = sphi 0, %s49
      %s67 = sphi 0, %s67
      %s69 = sphi 0, %s67
      %s70 = sphi 0, %s69
      %s84 = sphi 0, %s70
      %s90 = sphi 0, %s92
      %s93 = sphi 0, %s90
      %s94 = sphi 0, %s93
      %s110 = sphi 0, %s94
    $region4: #{tpu_custom_call.1} parent=1 // loop_header_branch
      %15 = sbr.rel (%p13) target = $region8
    $region5: #{tpu_custom_call.1} parent=1 // loop_body
      %s17 = ssub.s32 %s12, 1
      %s18 = ssub.s32 %s12, 2
      %s19 = sadd.s32 %s12, 1
      %s20 = ssub.s32 %s12, %s19
      %p21 = scmp.eq.s32.totalorder %s20, 0
      %s23 = sadd.s32 %s22, 1
      %s24 = scalar_select %p21, %s22, %s23
      %p27 = pneg %p21
      %p28 = scmp.eq.s32.totalorder %s12, 1
      %p29 = por %p27, %p28
      %p30 = scmp.ne.s32.totalorder %s22, %s25
      %p31 = scmp.eq.s32.totalorder %s12, 0
      %p32 = por %p30, %p31
      %p33 = scmp.ne.s32.totalorder %s22, %s25
      %p34 = scmp.eq.s32.totalorder %s17, 1
      %p35 = por %p33, %p34
      %p36 = scmp.ne.s32.totalorder %s25, %s26
      %p37 = scmp.eq.s32.totalorder %s17, 0
      %p38 = por %p36, %p37
      %p39 = scmp.ne.s32.totalorder %s25, %s26
      %p40 = scmp.eq.s32.totalorder %s18, 1
      %p41 = por %p39, %p40
      %p43 = scmp.ne.s32.totalorder %s26, %s42
      %p44 = scmp.eq.s32.totalorder %s18, 0
      %p45 = por %p43, %p44
      %s47 = sadd.s32 %s46, 1
      %p50 = scmp.eq.s32.totalorder %s12, 1
      %p51 = scmp.ne.s32.totalorder %s46, %s48
      %p52 = scmp.eq.s32.totalorder %s12, 0
      %p53 = por %p51, %p52
      %p54 = scmp.ne.s32.totalorder %s46, %s48
      %p55 = scmp.eq.s32.totalorder %s17, 1
      %p56 = por %p54, %p55
      %p57 = scmp.ne.s32.totalorder %s48, %s49
      %p58 = scmp.eq.s32.totalorder %s17, 0
      %p59 = por %p57, %p58
      %p60 = scmp.ne.s32.totalorder %s48, %s49
      %p61 = scmp.eq.s32.totalorder %s18, 1
      %p62 = por %p60, %p61
      %p64 = scmp.ne.s32.totalorder %s49, %s63
      %p65 = scmp.eq.s32.totalorder %s18, 0
      %p66 = por %p64, %p65
      %s68 = sadd.s32 %s67, 1
      %p71 = scmp.eq.s32.totalorder %s12, 1
      %p72 = scmp.ne.s32.totalorder %s67, %s69
      %p73 = scmp.eq.s32.totalorder %s12, 0
      %p74 = por %p72, %p73
      %p75 = scmp.ne.s32.totalorder %s67, %s69
      %p76 = scmp.eq.s32.totalorder %s17, 1
      %p77 = por %p75, %p76
      %p78 = scmp.ne.s32.totalorder %s69, %s70
      %p79 = scmp.eq.s32.totalorder %s17, 0
      %p80 = por %p78, %p79
      %p81 = scmp.ne.s32.totalorder %s69, %s70
      %p82 = scmp.eq.s32.totalorder %s18, 1
      %p83 = por %p81, %p82
      %p85 = scmp.ne.s32.totalorder %s70, %s84
      %p86 = scmp.eq.s32.totalorder %s18, 0
      %p87 = por %p85, %p86
      %s88 = ssub.s32 %s12, %s19
      %p89 = scmp.eq.s32.totalorder %s88, 0
      %s91 = sadd.s32 %s90, 1
      %s92 = scalar_select %p89, %s90, %s91
      %p95 = pneg %p89
      %p96 = scmp.eq.s32.totalorder %s12, 1
      %p97 = por %p95, %p96
      %p98 = scmp.ne.s32.totalorder %s90, %s93
      %p99 = scmp.eq.s32.totalorder %s12, 0
      %p100 = por %p98, %p99
      %p101 = scmp.ne.s32.totalorder %s90, %s93
      %p102 = scmp.eq.s32.totalorder %s17, 1
      %p103 = por %p101, %p102
      %p104 = scmp.ne.s32.totalorder %s93, %s94
      %p105 = scmp.eq.s32.totalorder %s17, 0
      %p106 = por %p104, %p105
      %p107 = scmp.ne.s32.totalorder %s93, %s94
      %p108 = scmp.eq.s32.totalorder %s18, 1
      %p109 = por %p107, %p108
      %p111 = scmp.ne.s32.totalorder %s94, %s110
      %p112 = scmp.eq.s32.totalorder %s18, 0
      %p113 = por %p111, %p112
      %p114 = scmp.le.s32.totalorder 1, %s12
      %p115 = scmp.lt.s32.totalorder %s12, 3
      %p116 = pnand %p114, %p115
      %p117 = pneg %p116
      // Predicated region
      $region9: #{tpu_custom_call.1} parent=5 // pred_check
        _
      $region10: #{tpu_custom_call.1} parent=5 // pred_check_branch
        %119 = sbr.rel (%p116) target = $region12
      $region11: #{tpu_custom_call.1} parent=5 // pred_region
        %s120 = ssub.s32 %s12, 1
        // Predicated region
        $region13: #{tpu_custom_call.1} parent=11 // pred_check
          %p121 = pneg %p59
        $region14: #{tpu_custom_call.1} parent=11 // pred_check_branch
          %123 = sbr.rel (%p121) target = $region16
        $region15: #{tpu_custom_call.1} parent=11 // pred_region
          _
        $region16: #{tpu_custom_call.1} parent=11 // pred_fallthru
          _
        // Predicated region
        $region17: #{tpu_custom_call.1} parent=11 // pred_check
          %p124 = pneg %p80
        $region18: #{tpu_custom_call.1} parent=11 // pred_check_branch
          %126 = sbr.rel (%p124) target = $region20
        $region19: #{tpu_custom_call.1} parent=11 // pred_region
          _
        $region20: #{tpu_custom_call.1} parent=11 // pred_fallthru
          _
      $region12: #{tpu_custom_call.1} parent=5 // pred_fallthru
        _
      %p127 = scmp.lt.s32.totalorder %s12, 2
      // Predicated region
      $region21: #{tpu_custom_call.1} parent=5 // pred_check
        %p128 = pneg %p127
      $region22: #{tpu_custom_call.1} parent=5 // pred_check_branch
        %130 = sbr.rel (%p128) target = $region24
      $region23: #{tpu_custom_call.1} parent=5 // pred_region
        // Predicated region
        $region25: #{tpu_custom_call.1} parent=23 // pred_check
          %p131 = pneg %p32
        $region26: #{tpu_custom_call.1} parent=23 // pred_check_branch
          %133 = sbr.rel (%p131) target = $region28
        $region27: #{tpu_custom_call.1} parent=23 // pred_region
          %p134 = scmp.lt.s32.totalorder %s12, 1
          %s135 = scalar_select %p134, %s12, 1
          %s136 = smul.addr %s135, 4
          %s137 = scalar_lea.vmem %s0, %s136
        $region28: #{tpu_custom_call.1} parent=23 // pred_fallthru
          _
      $region24: #{tpu_custom_call.1} parent=5 // pred_fallthru
        _
      %p138 = scmp.le.s32.totalorder 1, %s12
      %p139 = scmp.lt.s32.totalorder %s12, 3
      %p140 = pnand %p138, %p139
      %p141 = pneg %p140
      // Predicated region
      $region29: #{tpu_custom_call.1} parent=5 // pred_check
        _
      $region30: #{tpu_custom_call.1} parent=5 // pred_check_branch
        %143 = sbr.rel (%p140) target = $region32
      $region31: #{tpu_custom_call.1} parent=5 // pred_region
        %s144 = ssub.s32 %s12, 1
        %p145 = scmp.lt.s32.totalorder %s17, 1
        %s146 = scalar_select %p145, %s17, 1
        %s147 = smul.addr %s146, 4
        %s148 = scalar_lea.vmem %s0, %s147
        %p149 = pneg %p38
        %p150 = pneg %p35
        %p151 = pneg %p59
        %p152 = pneg %p56
        %p153 = pneg %p80
        %p154 = pneg %p77
        %p155 = pneg %p106
        %p156 = pneg %p103
        %s157 = sand.u32 %s93, 1
        %s158 = scalar_lea.sflag [#allocation3], %s157
        %s159 = sand.u32 %s93, 1
        %s160 = smul.addr %s159, 4
        %s161 = scalar_lea.vmem [#allocation2], %s160
        %p162 = scmp.lt.s32.totalorder %s17, 1
        %s163 = scalar_select %p162, %s17, 1
        %s164 = smul.addr %s163, 4
        %s165 = scalar_lea.vmem %s0, %s164
        %v166 = vld [vmem:[%s165] sm:$0xf]
        %vm167 = vcmask 125952
        %v168 = vsel %vm167, %v166, 0.0
        %169 = vadd.xlane.f32.xlu0 %v168
        %v170 = vpop.xlane.xlu0 %169
        %v171 = vrot.slane %v170, 4
        %v172 = vadd.f32 %v170, %v171
        %v173 = vrot.slane %v172, 2
        %v174 = vadd.f32 %v172, %v173
        %v175 = vrot.slane %v174, 1
        %v176 = vadd.f32 %v174, %v175
        %s177 = vtos %v176
        %s178 = smul.f32 %s177, 0.015625
        %v179 = vstv %s178
        %v180 = vsub.f32 %v166, %v179
        %v181 = vmul.f32 %v180, %v180
        %v182 = vsel %vm167, %v181, 0.0
        %183 = vadd.xlane.f32.xlu0 %v182
        %v184 = vpop.xlane.xlu0 %183
        %v185 = vrot.slane %v184, 4
        %v186 = vadd.f32 %v184, %v185
        %v187 = vrot.slane %v186, 2
        %v188 = vadd.f32 %v186, %v187
        %v189 = vrot.slane %v188, 1
        %v190 = vadd.f32 %v188, %v189
        %s191 = vtos %v190
        %s192 = smul.f32 %s191, 0.015625
        %s193 = sadd.f32 %s192, 1e-08
        %v194 = vstv %s193
        %v195 = vrsqrt.pop %v194
        %s196 = vtos %v195
        %v197 = vld [vmem:[%s1] sm:$0xf]
        %v198 = vstv %s196
        %v199 = vmul.f32 %v197, %v198
        %v200 = vld [vmem:[%s2] sm:$0xf]
        %v201 = vmul.f32 %v199, %v179
        %v202 = vsub.f32 %v200, %v201
        %204 = vset.pattern.permute.xlu0 0
        %205 = vperm.xlu0 %204, %v199
        %v206 = vpop.permute.xlu0 %205
        %v208 = vmul.f32 %v206, %v166
        %210 = vset.pattern.permute.xlu0 0
        %211 = vperm.xlu0 %210, %v202
        %v212 = vpop.permute.xlu0 %211
        %v214 = vadd.f32 %v208, %v212
        %215 = vst.msk [vmem:[%s161] sm:$0xf] %vm167, %v214
        %s216 = sand.u32 %s93, 1
        %s217 = scalar_lea.sflag [#allocation3], %s216
        %s218 = sand.u32 %s93, 1
        %s219 = smul.addr %s218, 4
        %s220 = scalar_lea.vmem [#allocation2], %s219
        // Predicated region
        $region33: #{tpu_custom_call.1} parent=31 // pred_check
          %p221 = pneg %p103
        $region34: #{tpu_custom_call.1} parent=31 // pred_check_branch
          %223 = sbr.rel (%p221) target = $region36
        $region35: #{tpu_custom_call.1} parent=31 // pred_region
          %s225 = ssub.s32 64, 64
          %226 = vsyncadd %s217, %s225
          %s227 = smul.addr %s17, 64
          %s228 = scalar_lea.hbm %s3, %s227
          %s230 = sshll.u32 %s220, 4
          %s231 = int_to_ptr.vmem [resolvable:$true] %s230
          %233 = dma.vmem_to_hbm [thread:$0]  %s231, 64, %s228, %s217
        $region36: #{tpu_custom_call.1} parent=31 // pred_fallthru
          _
      $region32: #{tpu_custom_call.1} parent=5 // pred_fallthru
        _
      %p234 = scmp.le.s32.totalorder 2, %s12
      // Predicated region
      $region37: #{tpu_custom_call.1} parent=5 // pred_check
        %p235 = pneg %p234
      $region38: #{tpu_custom_call.1} parent=5 // pred_check_branch
        %237 = sbr.rel (%p235) target = $region40
      $region39: #{tpu_custom_call.1} parent=5 // pred_region
        %s238 = ssub.s32 %s12, 2
        // Predicated region
        $region41: #{tpu_custom_call.1} parent=39 // pred_check
          %p239 = pneg %p109
        $region42: #{tpu_custom_call.1} parent=39 // pred_check_branch
          %241 = sbr.rel (%p239) target = $region44
        $region43: #{tpu_custom_call.1} parent=39 // pred_region
          %s242 = sand.u32 %s94, 1
          %s243 = scalar_lea.sflag [#allocation3], %s242
          %s244 = sand.u32 %s94, 1
          %s245 = smul.addr %s244, 4
          %s246 = scalar_lea.vmem [#allocation2], %s245
          %247 = dma.done %s243, 64
        $region44: #{tpu_custom_call.1} parent=39 // pred_fallthru
          _
      $region40: #{tpu_custom_call.1} parent=5 // pred_fallthru
        _
    $region6: #{tpu_custom_call.1} parent=1 // loop_footer
      %s16 = sadd.s32 1, %s12
    $region7: #{tpu_custom_call.1} parent=1 // loop_footer_branch
      %11 = sbr.rel target = $region3
    $region8: #{tpu_custom_call.1} parent=1 // loop_exit
      _
    %248 = vsyncpa [#allocation3], 1
    %s249 = scalar_lea.sflag [#allocation3], 1
    %250 = vsyncpa %s249, 1

</llo_original>
